<compile_context>
chip_gen: v7x
topology: tpu7x:2x2x1
jax: 0.10.0
libtpu: 0.0.40
codegen_flags: <defaults>
</compile_context>

<pallas_src>
import functools

import numpy as np
import jax
import jax.numpy as jnp
from jax.experimental import pallas as pl
from jax.experimental.pallas import tpu as pltpu

N_PAD = 128  # lane-dense per-layer output width (all TNet layer widths <= 128)


def _round_up(x, m):
    return (x + m - 1) // m * m


def _gumbel_softmax(key, logits, tau):
    g = jax.random.gumbel(key, logits.shape, dtype=logits.dtype)
    return jax.nn.softmax((logits + g) / tau, axis=-1)


# ------------------------------ Pallas kernel --------------------------------

def _tnet_kernel(x_ref, w_ref, o_ref, act_ref, *, n_seg0):
    """One grid step == one TNet layer.

    x_ref  : (n_seg0, B_pad, 128)      input slab ([1, x_flat], zero padded)
    w_ref  : (n_slots, 128, 2*N_PAD)   this layer's folded weights + bias row
                                       (a-branch cols [0,128), b-branch [128,256))
    o_ref  : (B_pad, N_PAD)            final-layer output (written on last step)
    act_ref: (n_slots, B_pad, 128)     persistent VMEM activation slots
    """
    i = pl.program_id(0)
    n_layers = pl.num_programs(0)
    n_slots = act_ref.shape[0]

    # ---- first layer: initialize the activation slots -----------------------
    @pl.when(i == 0)
    def _():
        act_ref[...] = jnp.zeros_like(act_ref)
        for k in range(n_seg0):
            act_ref[k] = x_ref[k]

    # ---- fused a/b matmul over all activation slots --------------------------
    # Slots beyond this layer's receptive field carry all-zero weight rows, so
    # a full static loop over n_slots is exact (and every dot is lane-dense).
    acc = jnp.dot(act_ref[0], w_ref[0], preferred_element_type=jnp.float32)
    for k in range(1, n_slots):
        acc = acc + jnp.dot(act_ref[k], w_ref[k],
                            preferred_element_type=jnp.float32)
    a = acc[:, :N_PAD]
    b = acc[:, N_PAD:]

    # ---- hidden layer: append NAND-style soft gate output to its slot --------
    @pl.when(i < n_layers - 1)
    def _():
        act_ref[n_seg0 + i] = 1.0 - a * b

    # ---- final layer: x_out = a ----------------------------------------------
    @pl.when(i == n_layers - 1)
    def _():
        o_ref[...] = a


def _tnet_forward_pallas(x_slab, w_all, *, n_layers, n_seg0, n_slots, b_pad):
    kernel = functools.partial(_tnet_kernel, n_seg0=n_seg0)
    return pl.pallas_call(
        kernel,
        out_shape=jax.ShapeDtypeStruct((b_pad, N_PAD), jnp.float32),
        grid_spec=pltpu.PrefetchScalarGridSpec(
            num_scalar_prefetch=0,
            grid=(n_layers,),
            in_specs=[
                # input slab: same block every step (stays resident in VMEM)
                pl.BlockSpec((n_seg0, b_pad, 128), lambda i: (0, 0, 0)),
                # per-layer folded weight slab, streamed (double buffered)
                pl.BlockSpec((None, n_slots, 128, 2 * N_PAD),
                             lambda i: (i, 0, 0, 0)),
            ],
            out_specs=pl.BlockSpec((b_pad, N_PAD), lambda i: (0, 0)),
            scratch_shapes=[pltpu.VMEM((n_slots, b_pad, 128), jnp.float32)],
        ),
        compiler_params=pltpu.CompilerParams(
            dimension_semantics=("arbitrary",),       # layers are sequential
            vmem_limit_bytes=32 * 1024 * 1024,        # generous; usage is ~2 MiB
        ),
    )(x_slab, w_all)


# --------------------------------- module ------------------------------------

class TNetPallas:
    def __init__(self, in_dim, out_dim, up_k=10, up_l=30, down_k=60, down_l=10,
                 tau=1.0, descent_layer=False, descent_layer_in=False,
                 param_key=None):
        self.in_dim = in_dim
        self.out_dim = out_dim
        self.tau = tau
        self.descent_layer = descent_layer
        self.descent_layer_in = descent_layer_in

        self.layer_nodenum_list = [in_dim] + [down_k] * down_l + [up_k] * up_l
        self.layer_list = self.layer_nodenum_list + [out_dim]
        self.layer_sum_list = [sum(self.layer_list[:i + 1])
                               for i in range(len(self.layer_list))]
        self.n_layers = len(self.layer_list) - 1
        assert max(self.layer_list[1:]) <= N_PAD, "layer widths must be <= 128"

        # padded activation-slot layout
        self.n_seg0 = pl.cdiv(1 + in_dim, 128)          # slots for [1, x_flat]
        self.n_slots = self.n_seg0 + (self.n_layers - 1)  # + one per hidden layer

        if param_key is None:
            param_key = jax.random.PRNGKey(42)
        # deterministic "randn" parameters, same shapes as torch's generate_layer
        self.layers = []
        self.which_layers = []
        k = param_key
        for num in range(self.n_layers):
            k, k1, k2 = jax.random.split(k, 3)
            n_out = self.layer_list[num + 1]
            s = sum(self.layer_list[:num + 1])
            self.layers.append(
                jax.random.normal(k1, (2, n_out, s, 2), dtype=jnp.float32))
            self.which_layers.append(
                jax.random.normal(k2, (2, n_out, num + 1), dtype=jnp.float32))

        self._forward_jit = jax.jit(self._forward_impl)

    # ----------------------- host-side weight folding -------------------------

    def _fold_layer(self, i, ab, wl, key):
        """abs + per-group gumbel-softmax + which_layer folded into one padded
        (n_slots, 128, 2*N_PAD) slab; row 0 of slot 0 is the bias row."""
        group_sizes = self.layer_list[:i + 1]
        S = sum(group_sizes)
        N = self.layer_list[i + 1]
        keys = jax.random.split(key, len(group_sizes) + 1)

        ab_abs = jnp.abs(ab)                               # (2, N, S, 2)
        segs, col = [], 0
        for gi, gs in enumerate(group_sizes):              # softmax over gs*2
            seg = ab_abs[:, :, col:col + gs, :].reshape(2, N, gs * 2)
            seg = _gumbel_softmax(keys[gi], seg, self.tau).reshape(2, N, gs, 2)
            segs.append(seg)
            col += gs
        ab_soft = jnp.concatenate(segs, axis=2)            # (2, N, S, 2)

        if self.descent_layer and i > 4:
            wl = jnp.abs(wl) * jnp.linspace(0.1, 1.0, wl.shape[-1])
        elif self.descent_layer_in and 0 < i <= 4:
            wl = jnp.abs(wl) * jnp.linspace(1.0, 0.1, wl.shape[-1])
        wl = _gumbel_softmax(keys[-1], wl, self.tau)       # (2, N, i+1)
        wl_rep = jnp.repeat(wl, np.asarray(group_sizes), axis=-1,
                            total_repeat_length=S)         # (2, N, S)

        c_x = ab_soft[..., 0] * wl_rep                     # coeff of x
        c_inv = ab_soft[..., 1] * wl_rep                   # coeff of (1 - x)
        w = c_x - c_inv                                    # (2, N, S)
        bias = jnp.sum(c_inv, axis=-1)                     # (2, N)

        # fuse a/b branches along the output (lane) axis, zero-pad to N_PAD
        wab = jnp.concatenate(
            [jnp.pad(w[0].T, ((0, 0), (0, N_PAD - N))),
             jnp.pad(w[1].T, ((0, 0), (0, N_PAD - N)))], axis=1)   # (S, 2*N_PAD)
        bias_row = jnp.concatenate(
            [jnp.pad(bias[0], (0, N_PAD - N)),
             jnp.pad(bias[1], (0, N_PAD - N))])[None, :]           # (1, 2*N_PAD)

        # scatter rows into the padded slot layout (pure pad/concat, no gather)
        seg0_rows = self.n_seg0 * 128
        pieces = [bias_row,
                  wab[:self.in_dim],
                  jnp.zeros((seg0_rows - 1 - self.in_dim, 2 * N_PAD),
                            jnp.float32)]
        for j in range(self.n_layers - 1):                 # one slot per hidden layer
            if j < i:
                lo, hi = self.layer_sum_list[j], self.layer_sum_list[j + 1]
                pieces.append(wab[lo:hi])
                pieces.append(jnp.zeros((128 - (hi - lo), 2 * N_PAD),
                                        jnp.float32))
            else:
                pieces.append(jnp.zeros((128, 2 * N_PAD), jnp.float32))
        slab = jnp.concatenate(pieces, axis=0)             # (n_slots*128, 2*N_PAD)
        return slab.reshape(self.n_slots, 128, 2 * N_PAD)

    # --------------------------------- forward --------------------------------

    def _forward_impl(self, layers, which_layers, x, noise_key):
        B = x.shape[0]
        b_pad = max(8, _round_up(B, 8))
        x_flat = x.reshape(B, -1).astype(jnp.float32)      # nn.Flatten()

        # input slab: [1 (bias), x_flat, 0-pad], split over n_seg0 slots
        xf = jnp.zeros((b_pad, self.n_seg0 * 128), jnp.float32)
        xf = xf.at[:, 0].set(1.0)
        xf = xf.at[:B, 1:1 + self.in_dim].set(x_flat)
        x_slab = xf.reshape(b_pad, self.n_seg0, 128).transpose(1, 0, 2)

        # fold all layers' gate parameters (fused by XLA under the outer jit)
        layer_keys = jax.random.split(noise_key, self.n_layers)
        w_all = jnp.stack(
            [self._fold_layer(i, layers[i], which_layers[i], layer_keys[i])
             for i in range(self.n_layers)], axis=0)       # (L, n_slots, 128, 2*N_PAD)

        out = _tnet_forward_pallas(
            x_slab, w_all, n_layers=self.n_layers, n_seg0=self.n_seg0,
            n_slots=self.n_slots, b_pad=b_pad)
        return out[:B, :self.out_dim]

    def forward(self, x, noise_key):
        return self._forward_jit(tuple(self.layers), tuple(self.which_layers),
                                 x, noise_key)


# --------------------- pure-JAX reference (torch-style math) ------------------

def _reference_forward(net, x, noise_key):
    """Direct transcription of the torch training-mode forward, using the same
    gumbel key-splitting order as the kernel path."""
    B = x.shape[0]
    x_in = x.reshape(B, -1).astype(jnp.float32)
    layer_keys = jax.random.split(noise_key, net.n_layers)
    for i in range(net.n_layers):
        group_sizes = net.layer_list[:i + 1]
        S = sum(group_sizes)
        N = net.layer_list[i + 1]
        keys = jax.random.split(layer_keys[i], len(group_sizes) + 1)

        ab_abs = jnp.abs(net.layers[i])
        segs, col = [], 0
        for gi, gs in enumerate(group_sizes):
            seg = ab_abs[:, :, col:col + gs, :].reshape(2, N, gs * 2)
            seg = _gumbel_softmax(keys[gi], seg, net.tau).reshape(2, N, gs, 2)
            segs.append(seg)
            col += gs
        ab = jnp.concatenate(segs, axis=2)

        wl = net.which_layers[i]
        if net.descent_layer and i > 4:
            wl = jnp.abs(wl) * jnp.linspace(0.1, 1.0, wl.shape[-1])
        elif net.descent_layer_in and 0 < i <= 4:
            wl = jnp.abs(wl) * jnp.linspace(1.0, 0.1, wl.shape[-1])
        wl = _gumbel_softmax(keys[-1], wl, net.tau)
        wl_rep = jnp.repeat(wl, np.asarray(group_sizes), axis=-1,
                            total_repeat_length=S)

        a_unit = (x_in[:, None, :] * ab[0, :, :, 0][None]
                  + (1.0 - x_in[:, None, :]) * ab[0, :, :, 1][None])
        b_unit = (x_in[:, None, :] * ab[1, :, :, 0][None]
                  + (1.0 - x_in[:, None, :]) * ab[1, :, :, 1][None])
        a = (a_unit * wl_rep[0][None]).sum(-1)
        b = (b_unit * wl_rep[1][None]).sum(-1)
        if i == net.n_layers - 1:
            return a
        x_out = 1.0 - a * b
        x_in = jnp.concatenate([x_in, x_out], axis=-1)


# ----------------------------------- main -------------------------------------

if __name__ == "__main__":
    key = jax.random.PRNGKey(0)
    kx, kp, kn = jax.random.split(key, 3)

    # small shapes: NCHW input (2, 4, 2, 2) -> in_dim = 16
    B, C, H, W = 2, 4, 2, 2
    x = jax.random.uniform(kx, (B, C, H, W), dtype=jnp.float32)

    net = TNetPallas(in_dim=C * H * W, out_dim=8,
                     up_k=8, up_l=2, down_k=16, down_l=2,
                     tau=1.0, param_key=kp)

    out = net.forward(x, noise_key=kn)
    out = jax.block_until_ready(out)
    assert out.shape == (B, 8)
    assert bool(jnp.all(jnp.isfinite(out)))

    # validate the fused kernel against the straightforward (torch-style) math
    ref = _reference_forward(net, x, kn)
    np.testing.assert_allclose(np.asarray(out), np.asarray(ref),
                               rtol=2e-2, atol=2e-2)

    print("KERNEL_OK")
</pallas_src>

<mosaic_0001>
module attributes {stable_mosaic.version = 11 : i64} {
  func.func @_tnet_kernel(%arg0: i32, %arg1: memref<1x8x128xf32, #tpu.memory_space<vmem>>, %arg2: memref<1x5x128x256xf32, #tpu.memory_space<vmem>>, %arg3: memref<8x128xf32, #tpu.memory_space<vmem>>, %arg4: memref<5x8x128xf32, #tpu.memory_space<vmem>>) attributes {dimension_semantics = [#tpu.dimension_semantics<arbitrary>], iteration_bounds = array<i64: 5>, scalar_prefetch = 0 : i64, scratch_operands = 1 : i64, tpu.core_type = #tpu.core_type<tc>, window_params = [{pipeline_mode = #tpu.pipeline_mode<synchronous>, transform_indices = @transform_0, window_bounds = array<i64: 1, 8, 128>}, {transform_indices = @transform_1, window_bounds = array<i64: 1, 5, 128, 256>}, {pipeline_mode = #tpu.pipeline_mode<synchronous>, transform_indices = @transform_2, window_bounds = array<i64: 8, 128>}]} {
    %c0_i32 = arith.constant 0 : i32
    %0 = arith.cmpi eq, %arg0, %c0_i32 : i32
    %1 = arith.extui %0 : i1 to i32
    %c0_i32_0 = arith.constant 0 : i32
    %2 = arith.cmpi ne, %1, %c0_i32_0 : i32
    scf.if %2 {
      %cst_38 = arith.constant 0.000000e+00 : f32
      %40 = vector.broadcast %cst_38 : f32 to vector<5x8x128xf32>
      %c0_39 = arith.constant 0 : index
      %c0_40 = arith.constant 0 : index
      %c0_41 = arith.constant 0 : index
      %41 = vector.load %arg4[%c0_39, %c0_40, %c0_41] : memref<5x8x128xf32, #tpu.memory_space<vmem>>, vector<5x8x128xf32>
      tpu.vector_store %arg4[%c0_39, %c0_40, %c0_41], %40 {strides = array<i32>} : memref<5x8x128xf32, #tpu.memory_space<vmem>>, vector<5x8x128xf32>,
      %c0_42 = arith.constant 0 : index
      %c0_43 = arith.constant 0 : index
      %c0_44 = arith.constant 0 : index
      %42 = vector.load %arg1[%c0_42, %c0_43, %c0_44] : memref<1x8x128xf32, #tpu.memory_space<vmem>>, vector<1x8x128xf32>
      %43 = vector.shape_cast %42 : vector<1x8x128xf32> to vector<8x128xf32>
      %c0_45 = arith.constant 0 : index
      %c0_46 = arith.constant 0 : index
      %c0_47 = arith.constant 0 : index
      %44 = vector.load %arg4[%c0_45, %c0_46, %c0_47] : memref<5x8x128xf32, #tpu.memory_space<vmem>>, vector<1x8x128xf32>
      %45 = vector.shape_cast %44 : vector<1x8x128xf32> to vector<8x128xf32>
      %46 = vector.shape_cast %43 : vector<8x128xf32> to vector<1x8x128xf32>
      tpu.vector_store %arg4[%c0_45, %c0_46, %c0_47], %46 {strides = array<i32>} : memref<5x8x128xf32, #tpu.memory_space<vmem>>, vector<1x8x128xf32>,
    } else {
    }
    %c0 = arith.constant 0 : index
    %c0_1 = arith.constant 0 : index
    %c0_2 = arith.constant 0 : index
    %3 = vector.load %arg4[%c0, %c0_1, %c0_2] : memref<5x8x128xf32, #tpu.memory_space<vmem>>, vector<1x8x128xf32>
    %4 = vector.shape_cast %3 : vector<1x8x128xf32> to vector<8x128xf32>
    %c0_3 = arith.constant 0 : index
    %c0_4 = arith.constant 0 : index
    %c0_5 = arith.constant 0 : index
    %c0_6 = arith.constant 0 : index
    %5 = vector.load %arg2[%c0_3, %c0_4, %c0_5, %c0_6] : memref<1x5x128x256xf32, #tpu.memory_space<vmem>>, vector<1x1x128x256xf32>
    %6 = vector.shape_cast %5 : vector<1x1x128x256xf32> to vector<128x256xf32>
    %cst = arith.constant dense<0.000000e+00> : vector<8x256xf32>
    %7 = tpu.matmul %4, %6, %cst {dimension_numbers = #tpu.dot_dimension_numbers<[1], [0], [0], [1], [0, 0, 1, 1], [], []>} : vector<8x128xf32>, vector<128x256xf32>, vector<8x256xf32> -> vector<8x256xf32>
    %c1 = arith.constant 1 : index
    %c0_7 = arith.constant 0 : index
    %c0_8 = arith.constant 0 : index
    %8 = vector.load %arg4[%c1, %c0_7, %c0_8] : memref<5x8x128xf32, #tpu.memory_space<vmem>>, vector<1x8x128xf32>
    %9 = vector.shape_cast %8 : vector<1x8x128xf32> to vector<8x128xf32>
    %c0_9 = arith.constant 0 : index
    %c1_10 = arith.constant 1 : index
    %c0_11 = arith.constant 0 : index
    %c0_12 = arith.constant 0 : index
    %10 = vector.load %arg2[%c0_9, %c1_10, %c0_11, %c0_12] : memref<1x5x128x256xf32, #tpu.memory_space<vmem>>, vector<1x1x128x256xf32>
    %11 = vector.shape_cast %10 : vector<1x1x128x256xf32> to vector<128x256xf32>
    %cst_13 = arith.constant dense<0.000000e+00> : vector<8x256xf32>
    %12 = tpu.matmul %9, %11, %cst_13 {dimension_numbers = #tpu.dot_dimension_numbers<[1], [0], [0], [1], [0, 0, 1, 1], [], []>} : vector<8x128xf32>, vector<128x256xf32>, vector<8x256xf32> -> vector<8x256xf32>
    %13 = arith.addf %7, %12 : vector<8x256xf32>
    %c2 = arith.constant 2 : index
    %c0_14 = arith.constant 0 : index
    %c0_15 = arith.constant 0 : index
    %14 = vector.load %arg4[%c2, %c0_14, %c0_15] : memref<5x8x128xf32, #tpu.memory_space<vmem>>, vector<1x8x128xf32>
    %15 = vector.shape_cast %14 : vector<1x8x128xf32> to vector<8x128xf32>
    %c0_16 = arith.constant 0 : index
    %c2_17 = arith.constant 2 : index
    %c0_18 = arith.constant 0 : index
    %c0_19 = arith.constant 0 : index
    %16 = vector.load %arg2[%c0_16, %c2_17, %c0_18, %c0_19] : memref<1x5x128x256xf32, #tpu.memory_space<vmem>>, vector<1x1x128x256xf32>
    %17 = vector.shape_cast %16 : vector<1x1x128x256xf32> to vector<128x256xf32>
    %cst_20 = arith.constant dense<0.000000e+00> : vector<8x256xf32>
    %18 = tpu.matmul %15, %17, %cst_20 {dimension_numbers = #tpu.dot_dimension_numbers<[1], [0], [0], [1], [0, 0, 1, 1], [], []>} : vector<8x128xf32>, vector<128x256xf32>, vector<8x256xf32> -> vector<8x256xf32>
    %19 = arith.addf %13, %18 : vector<8x256xf32>
    %c3 = arith.constant 3 : index
    %c0_21 = arith.constant 0 : index
    %c0_22 = arith.constant 0 : index
    %20 = vector.load %arg4[%c3, %c0_21, %c0_22] : memref<5x8x128xf32, #tpu.memory_space<vmem>>, vector<1x8x128xf32>
    %21 = vector.shape_cast %20 : vector<1x8x128xf32> to vector<8x128xf32>
    %c0_23 = arith.constant 0 : index
    %c3_24 = arith.constant 3 : index
    %c0_25 = arith.constant 0 : index
    %c0_26 = arith.constant 0 : index
    %22 = vector.load %arg2[%c0_23, %c3_24, %c0_25, %c0_26] : memref<1x5x128x256xf32, #tpu.memory_space<vmem>>, vector<1x1x128x256xf32>
    %23 = vector.shape_cast %22 : vector<1x1x128x256xf32> to vector<128x256xf32>
    %cst_27 = arith.constant dense<0.000000e+00> : vector<8x256xf32>
    %24 = tpu.matmul %21, %23, %cst_27 {dimension_numbers = #tpu.dot_dimension_numbers<[1], [0], [0], [1], [0, 0, 1, 1], [], []>} : vector<8x128xf32>, vector<128x256xf32>, vector<8x256xf32> -> vector<8x256xf32>
    %25 = arith.addf %19, %24 : vector<8x256xf32>
    %c4 = arith.constant 4 : index
    %c0_28 = arith.constant 0 : index
    %c0_29 = arith.constant 0 : index
    %26 = vector.load %arg4[%c4, %c0_28, %c0_29] : memref<5x8x128xf32, #tpu.memory_space<vmem>>, vector<1x8x128xf32>
    %27 = vector.shape_cast %26 : vector<1x8x128xf32> to vector<8x128xf32>
    %c0_30 = arith.constant 0 : index
    %c4_31 = arith.constant 4 : index
    %c0_32 = arith.constant 0 : index
    %c0_33 = arith.constant 0 : index
    %28 = vector.load %arg2[%c0_30, %c4_31, %c0_32, %c0_33] : memref<1x5x128x256xf32, #tpu.memory_space<vmem>>, vector<1x1x128x256xf32>
    %29 = vector.shape_cast %28 : vector<1x1x128x256xf32> to vector<128x256xf32>
    %cst_34 = arith.constant dense<0.000000e+00> : vector<8x256xf32>
    %30 = tpu.matmul %27, %29, %cst_34 {dimension_numbers = #tpu.dot_dimension_numbers<[1], [0], [0], [1], [0, 0, 1, 1], [], []>} : vector<8x128xf32>, vector<128x256xf32>, vector<8x256xf32> -> vector<8x256xf32>
    %31 = arith.addf %25, %30 : vector<8x256xf32>
    %32 = vector.extract_strided_slice %31 {offsets = [0, 0], sizes = [8, 128], strides = [1, 1]} : vector<8x256xf32> to vector<8x128xf32>
    %33 = vector.extract_strided_slice %31 {offsets = [0, 128], sizes = [8, 128], strides = [1, 1]} : vector<8x256xf32> to vector<8x128xf32>
    %c4_i32 = arith.constant 4 : i32
    %34 = arith.cmpi slt, %arg0, %c4_i32 : i32
    %35 = arith.extui %34 : i1 to i32
    %c0_i32_35 = arith.constant 0 : i32
    %36 = arith.cmpi ne, %35, %c0_i32_35 : i32
    scf.if %36 {
      %40 = arith.mulf %32, %33 : vector<8x128xf32>
      %cst_38 = arith.constant 1.000000e+00 : f32
      %41 = vector.broadcast %cst_38 : f32 to vector<8x128xf32>
      %42 = arith.subf %41, %40 : vector<8x128xf32>
      %c1_i32 = arith.constant 1 : i32
      %43 = arith.addi %c1_i32, %arg0 : i32
      %44 = arith.index_cast %43 : i32 to index
      %c0_39 = arith.constant 0 : index
      %c0_40 = arith.constant 0 : index
      %45 = vector.load %arg4[%44, %c0_39, %c0_40] : memref<5x8x128xf32, #tpu.memory_space<vmem>>, vector<1x8x128xf32>
      %46 = vector.shape_cast %45 : vector<1x8x128xf32> to vector<8x128xf32>
      %47 = vector.shape_cast %42 : vector<8x128xf32> to vector<1x8x128xf32>
      tpu.vector_store %arg4[%44, %c0_39, %c0_40], %47 {strides = array<i32>} : memref<5x8x128xf32, #tpu.memory_space<vmem>>, vector<1x8x128xf32>,
    } else {
    }
    %c4_i32_36 = arith.constant 4 : i32
    %37 = arith.cmpi eq, %arg0, %c4_i32_36 : i32
    %38 = arith.extui %37 : i1 to i32
    %c0_i32_37 = arith.constant 0 : i32
    %39 = arith.cmpi ne, %38, %c0_i32_37 : i32
    scf.if %39 {
      %c0_38 = arith.constant 0 : index
      %c0_39 = arith.constant 0 : index
      %40 = vector.load %arg3[%c0_38, %c0_39] : memref<8x128xf32, #tpu.memory_space<vmem>>, vector<8x128xf32>
      tpu.vector_store %arg3[%c0_38, %c0_39], %32 {strides = array<i32>} : memref<8x128xf32, #tpu.memory_space<vmem>>, vector<8x128xf32>,
    } else {
    }
    return
  }
  func.func @transform_0(%arg0: i32) -> (i32, i32, i32) {
    %c0_i32 = arith.constant 0 : i32
    %c0_i32_0 = arith.constant 0 : i32
    %c0_i32_1 = arith.constant 0 : i32
    %c0_i32_2 = arith.constant 0 : i32
    return %c0_i32, %c0_i32_0, %c0_i32_1 : i32, i32, i32
  }
  func.func @transform_1(%arg0: i32) -> (i32, i32, i32, i32) {
    %c0_i32 = arith.constant 0 : i32
    %c0_i32_0 = arith.constant 0 : i32
    %c0_i32_1 = arith.constant 0 : i32
    %c0_i32_2 = arith.constant 0 : i32
    return %arg0, %c0_i32, %c0_i32_0, %c0_i32_1 : i32, i32, i32, i32
  }
  func.func @transform_2(%arg0: i32) -> (i32, i32) {
    %c0_i32 = arith.constant 0 : i32
    %c0_i32_0 = arith.constant 0 : i32
    %c0_i32_1 = arith.constant 0 : i32
    return %c0_i32, %c0_i32_0 : i32, i32
  }
}

</mosaic_0001>

<llo_original>
// kernel: _forward_impl.1
$region0: #{_forward_impl.1}
  #allocation0 [shape = 'u32[]', space=smem, size = 0x4, offset = 0x4, fixed_abs, tag = 'smem constant byte address 0x4 - core index']
  #allocation1 [shape = 'u32[144,128]{1,0:T(1,128)}', space=vmem, size = 0x12000, scoped, tag = 'internal scratch']
  #allocation2 [shape = 'f32[5,8,128]{2,1,0:T(8,128)}', space=vmem, size = 0x5000, scoped, tag = 'scratch operand']
  %s0 = inlined_call_operand.vmem [shape: f32[1,8,128], index: 0, kind: input, shape index: {}]
  %s1 = inlined_call_operand.vmem [shape: f32[5,5,128,256], index: 1, kind: input, shape index: {}]
  %s2 = inlined_call_operand.vmem [shape: f32[8,128], index: 2, kind: output, shape index: {}]
  %s3 = sld [smem:[#allocation0]]
  $region53: #{_forward_impl.1} parent=0
    _
  %s5 = ssub.s32 1, %s3
  %s6 = scalar_select 0, %s5, %s3
  loop: start=0, step=1, limit=7
  $region2: #{_forward_impl.1} parent=0 // loop_pre_header
    _
  $region3: #{_forward_impl.1} parent=0 // loop_header
    %s8 = sphi 0, %s12
    %p9 = scmp.ge.s32.totalorder %s8, 7
    %s16 = sphi 0, %s16
    %s18 = sphi 0, %s16
    %s19 = sphi 0, %s18
    %s33 = sphi 0, %s19
    %s39 = sphi 0, %s41
    %s42 = sphi 0, %s39
    %s43 = sphi 0, %s42
    %s59 = sphi 0, %s43
    %s63 = sphi 0, %s63
    %s65 = sphi 0, %s63
    %s66 = sphi 0, %s65
    %s80 = sphi 0, %s66
  $region4: #{_forward_impl.1} parent=0 // loop_header_branch
    %11 = sbr.rel (%p9) target = $region8
  $region5: #{_forward_impl.1} parent=0 // loop_body
    %s13 = ssub.s32 %s8, 1
    %s14 = ssub.s32 %s8, 2
    %s15 = sadd.s32 %s8, 1
    %s17 = sadd.s32 %s16, 1
    %p20 = scmp.eq.s32.totalorder %s8, 4
    %p21 = scmp.ne.s32.totalorder %s16, %s18
    %p22 = scmp.eq.s32.totalorder %s8, 0
    %p23 = por %p21, %p22
    %p24 = scmp.ne.s32.totalorder %s16, %s18
    %p25 = scmp.eq.s32.totalorder %s13, 4
    %p26 = por %p24, %p25
    %p27 = scmp.ne.s32.totalorder %s18, %s19
    %p28 = scmp.eq.s32.totalorder %s13, 0
    %p29 = por %p27, %p28
    %p30 = scmp.ne.s32.totalorder %s18, %s19
    %p31 = scmp.eq.s32.totalorder %s14, 4
    %p32 = por %p30, %p31
    %p34 = scmp.ne.s32.totalorder %s19, %s33
    %p35 = scmp.eq.s32.totalorder %s14, 0
    %p36 = por %p34, %p35
    %s37 = ssub.s32 %s8, %s15
    %p38 = scmp.eq.s32.totalorder %s37, 0
    %s40 = sadd.s32 %s39, 1
    %s41 = scalar_select %p38, %s39, %s40
    %p44 = pneg %p38
    %p45 = scmp.eq.s32.totalorder %s8, 4
    %p46 = por %p44, %p45
    %p47 = scmp.ne.s32.totalorder %s39, %s42
    %p48 = scmp.eq.s32.totalorder %s8, 0
    %p49 = por %p47, %p48
    %p50 = scmp.ne.s32.totalorder %s39, %s42
    %p51 = scmp.eq.s32.totalorder %s13, 4
    %p52 = por %p50, %p51
    %p53 = scmp.ne.s32.totalorder %s42, %s43
    %p54 = scmp.eq.s32.totalorder %s13, 0
    %p55 = por %p53, %p54
    %p56 = scmp.ne.s32.totalorder %s42, %s43
    %p57 = scmp.eq.s32.totalorder %s14, 4
    %p58 = por %p56, %p57
    %p60 = scmp.ne.s32.totalorder %s43, %s59
    %p61 = scmp.eq.s32.totalorder %s14, 0
    %p62 = por %p60, %p61
    %s64 = sadd.s32 %s63, 1
    %p67 = scmp.eq.s32.totalorder %s8, 4
    %p68 = scmp.ne.s32.totalorder %s63, %s65
    %p69 = scmp.eq.s32.totalorder %s8, 0
    %p70 = por %p68, %p69
    %p71 = scmp.ne.s32.totalorder %s63, %s65
    %p72 = scmp.eq.s32.totalorder %s13, 4
    %p73 = por %p71, %p72
    %p74 = scmp.ne.s32.totalorder %s65, %s66
    %p75 = scmp.eq.s32.totalorder %s13, 0
    %p76 = por %p74, %p75
    %p77 = scmp.ne.s32.totalorder %s65, %s66
    %p78 = scmp.eq.s32.totalorder %s14, 4
    %p79 = por %p77, %p78
    %p81 = scmp.ne.s32.totalorder %s66, %s80
    %p82 = scmp.eq.s32.totalorder %s14, 0
    %p83 = por %p81, %p82
    %p84 = scmp.le.s32.totalorder 1, %s8
    %p85 = scmp.lt.s32.totalorder %s8, 6
    %p86 = pnand %p84, %p85
    %p87 = pneg %p86
    // Predicated region
    $region9: #{_forward_impl.1} parent=5 // pred_check
      _
    $region10: #{_forward_impl.1} parent=5 // pred_check_branch
      %89 = sbr.rel (%p86) target = $region12
    $region11: #{_forward_impl.1} parent=5 // pred_region
      %s90 = ssub.s32 %s8, 1
      // Predicated region
      $region13: #{_forward_impl.1} parent=11 // pred_check
        %p91 = pneg %p29
      $region14: #{_forward_impl.1} parent=11 // pred_check_branch
        %93 = sbr.rel (%p91) target = $region16
      $region15: #{_forward_impl.1} parent=11 // pred_region
        _
      $region16: #{_forward_impl.1} parent=11 // pred_fallthru
        _
    $region12: #{_forward_impl.1} parent=5 // pred_fallthru
      _
    %p94 = scmp.lt.s32.totalorder %s8, 5
    // Predicated region
    $region17: #{_forward_impl.1} parent=5 // pred_check
      %p95 = pneg %p94
    $region18: #{_forward_impl.1} parent=5 // pred_check_branch
      %97 = sbr.rel (%p95) target = $region20
    $region19: #{_forward_impl.1} parent=5 // pred_region
      // Predicated region
      $region21: #{_forward_impl.1} parent=19 // pred_check
        %p98 = pneg %p49
      $region22: #{_forward_impl.1} parent=19 // pred_check_branch
        %100 = sbr.rel (%p98) target = $region24
      $region23: #{_forward_impl.1} parent=19 // pred_region
        %p101 = scmp.lt.s32.totalorder %s8, 4
        %s102 = scalar_select %p101, %s8, 4
        %s103 = smul.addr %s102, 160
        %s104 = smul.addr %s103, 8
        %s105 = scalar_lea.vmem %s1, %s104
      $region24: #{_forward_impl.1} parent=19 // pred_fallthru
        _
    $region20: #{_forward_impl.1} parent=5 // pred_fallthru
      _
    %p106 = scmp.le.s32.totalorder 1, %s8
    %p107 = scmp.lt.s32.totalorder %s8, 6
    %p108 = pnand %p106, %p107
    %p109 = pneg %p108
    // Predicated region
    $region25: #{_forward_impl.1} parent=5 // pred_check
      _
    $region26: #{_forward_impl.1} parent=5 // pred_check_branch
      %111 = sbr.rel (%p108) target = $region28
    $region27: #{_forward_impl.1} parent=5 // pred_region
      %s112 = ssub.s32 %s8, 1
      %p113 = pneg %p29
      %p114 = pneg %p26
      %p115 = scmp.lt.s32.totalorder %s13, 4
      %s116 = scalar_select %p115, %s13, 4
      %s117 = smul.addr %s116, 160
      %s118 = smul.addr %s117, 8
      %s119 = scalar_lea.vmem %s1, %s118
      %p120 = pneg %p55
      %p121 = pneg %p52
      %p122 = pneg %p76
      %p123 = pneg %p73
      %p124 = scmp.lt.s32.totalorder %s13, 4
      %s125 = scalar_select %p124, %s13, 4
      %s126 = smul.addr %s125, 160
      %s127 = smul.addr %s126, 8
      %s128 = scalar_lea.vmem %s1, %s127
      %p129 = scmp.eq.s32.totalorder %s13, 0
      // Predicated region
      $region29: #{_forward_impl.1} parent=27 // pred_check
        %p130 = pneg %p129
      $region30: #{_forward_impl.1} parent=27 // pred_check_branch
        %132 = sbr.rel (%p130) target = $region32
      $region31: #{_forward_impl.1} parent=27 // pred_region
        %133 = vst [vmem:[#allocation2] sm:$0xff] 0.0
        %134 = vst [vmem:[#allocation2 + $0x8] sm:$0xff] 0.0
        %135 = vst [vmem:[#allocation2 + $0x10] sm:$0xff] 0.0
        %136 = vst [vmem:[#allocation2 + $0x18] sm:$0xff] 0.0
        %137 = vst [vmem:[#allocation2 + $0x20] sm:$0xff] 0.0
        %v138 = vld [vmem:[%s0] sm:$0xff]
        %139 = vst [vmem:[#allocation2] sm:$0xff] %v138
      $region32: #{_forward_impl.1} parent=27 // pred_fallthru
        _
      %v140 = vld [vmem:[#allocation2] sm:$0xff]
      %v141 = vld [vmem:[%s128] sm:$0xff]
      %v142 = vld [vmem:[%s128 + $0x8] sm:$0xff]
      %v143 = vld [vmem:[%s128 + $0x10] sm:$0xff]
      %v144 = vld [vmem:[%s128 + $0x18] sm:$0xff]
      %v145 = vld [vmem:[%s128 + $0x20] sm:$0xff]
      %v146 = vld [vmem:[%s128 + $0x28] sm:$0xff]
      %v147 = vld [vmem:[%s128 + $0x30] sm:$0xff]
      %v148 = vld [vmem:[%s128 + $0x38] sm:$0xff]
      %v149 = vld [vmem:[%s128 + $0x40] sm:$0xff]
      %v150 = vld [vmem:[%s128 + $0x48] sm:$0xff]
      %v151 = vld [vmem:[%s128 + $0x50] sm:$0xff]
      %v152 = vld [vmem:[%s128 + $0x58] sm:$0xff]
      %v153 = vld [vmem:[%s128 + $0x60] sm:$0xff]
      %v154 = vld [vmem:[%s128 + $0x68] sm:$0xff]
      %v155 = vld [vmem:[%s128 + $0x70] sm:$0xff]
      %v156 = vld [vmem:[%s128 + $0x78] sm:$0xff]
      %v157 = vld [vmem:[%s128 + $0x80] sm:$0xff]
      %v158 = vld [vmem:[%s128 + $0x88] sm:$0xff]
      %v159 = vld [vmem:[%s128 + $0x90] sm:$0xff]
      %v160 = vld [vmem:[%s128 + $0x98] sm:$0xff]
      %v161 = vld [vmem:[%s128 + $0xa0] sm:$0xff]
      %v162 = vld [vmem:[%s128 + $0xa8] sm:$0xff]
      %v163 = vld [vmem:[%s128 + $0xb0] sm:$0xff]
      %v164 = vld [vmem:[%s128 + $0xb8] sm:$0xff]
      %v165 = vld [vmem:[%s128 + $0xc0] sm:$0xff]
      %v166 = vld [vmem:[%s128 + $0xc8] sm:$0xff]
      %v167 = vld [vmem:[%s128 + $0xd0] sm:$0xff]
      %v168 = vld [vmem:[%s128 + $0xd8] sm:$0xff]
      %v169 = vld [vmem:[%s128 + $0xe0] sm:$0xff]
      %v170 = vld [vmem:[%s128 + $0xe8] sm:$0xff]
      %v171 = vld [vmem:[%s128 + $0xf0] sm:$0xff]
      %v172 = vld [vmem:[%s128 + $0xf8] sm:$0xff]
      %s173 = scalar_lea.vmem [#allocation2], 8
      %v174 = vld [vmem:[%s173] sm:$0xff]
      %s175 = scalar_lea.vmem %s128, 256
      %v176 = vld [vmem:[%s175] sm:$0xff]
      %v177 = vld [vmem:[%s175 + $0x8] sm:$0xff]
      %v178 = vld [vmem:[%s175 + $0x10] sm:$0xff]
      %v179 = vld [vmem:[%s175 + $0x18] sm:$0xff]
      %v180 = vld [vmem:[%s175 + $0x20] sm:$0xff]
      %v181 = vld [vmem:[%s175 + $0x28] sm:$0xff]
      %v182 = vld [vmem:[%s175 + $0x30] sm:$0xff]
      %v183 = vld [vmem:[%s175 + $0x38] sm:$0xff]
      %v184 = vld [vmem:[%s175 + $0x40] sm:$0xff]
      %v185 = vld [vmem:[%s175 + $0x48] sm:$0xff]
      %v186 = vld [vmem:[%s175 + $0x50] sm:$0xff]
      %v187 = vld [vmem:[%s175 + $0x58] sm:$0xff]
      %v188 = vld [vmem:[%s175 + $0x60] sm:$0xff]
      %v189 = vld [vmem:[%s175 + $0x68] sm:$0xff]
      %v190 = vld [vmem:[%s175 + $0x70] sm:$0xff]
      %v191 = vld [vmem:[%s175 + $0x78] sm:$0xff]
      %v192 = vld [vmem:[%s175 + $0x80] sm:$0xff]
      %v193 = vld [vmem:[%s175 + $0x88] sm:$0xff]
      %v194 = vld [vmem:[%s175 + $0x90] sm:$0xff]
      %v195 = vld [vmem:[%s175 + $0x98] sm:$0xff]
      %v196 = vld [vmem:[%s175 + $0xa0] sm:$0xff]
      %v197 = vld [vmem:[%s175 + $0xa8] sm:$0xff]
      %v198 = vld [vmem:[%s175 + $0xb0] sm:$0xff]
      %v199 = vld [vmem:[%s175 + $0xb8] sm:$0xff]
      %v200 = vld [vmem:[%s175 + $0xc0] sm:$0xff]
      %v201 = vld [vmem:[%s175 + $0xc8] sm:$0xff]
      %v202 = vld [vmem:[%s175 + $0xd0] sm:$0xff]
      %v203 = vld [vmem:[%s175 + $0xd8] sm:$0xff]
      %v204 = vld [vmem:[%s175 + $0xe0] sm:$0xff]
      %v205 = vld [vmem:[%s175 + $0xe8] sm:$0xff]
      %v206 = vld [vmem:[%s175 + $0xf0] sm:$0xff]
      %v207 = vld [vmem:[%s175 + $0xf8] sm:$0xff]
      %208 = vmatprep.subr.mxu0 %v177
      %209 = vmatpush1.msra.mxu0 %v176
      %210 = vmatprep.subr.mxu0 %v179
      %211 = vmatpush1.msra.mxu0 %v178
      %212 = vmatprep.subr.mxu0 %v181
      %213 = vmatpush1.msra.mxu0 %v180
      %214 = vmatprep.subr.mxu0 %v183
      %215 = vmatpush1.msra.mxu0 %v182
      %216 = vmatprep.subr.mxu0 %v185
      %217 = vmatpush1.msra.mxu0 %v184
      %218 = vmatprep.subr.mxu0 %v187
      %219 = vmatpush1.msra.mxu0 %v186
      %220 = vmatprep.subr.mxu0 %v189
      %221 = vmatpush1.msra.mxu0 %v188
      %222 = vmatprep.subr.mxu0 %v191
      %223 = vmatpush1.msra.mxu0 %v190
      %224 = vmatprep.subr.mxu0 %v193
      %225 = vmatpush1.msra.mxu0 %v192
      %226 = vmatprep.subr.mxu0 %v195
      %227 = vmatpush1.msra.mxu0 %v194
      %228 = vmatprep.subr.mxu0 %v197
      %229 = vmatpush1.msra.mxu0 %v196
      %230 = vmatprep.subr.mxu0 %v199
      %231 = vmatpush1.msra.mxu0 %v198
      %232 = vmatprep.subr.mxu0 %v201
      %233 = vmatpush1.msra.mxu0 %v200
      %234 = vmatprep.subr.mxu0 %v203
      %235 = vmatpush1.msra.mxu0 %v202
      %236 = vmatprep.subr.mxu0 %v205
      %237 = vmatpush1.msra.mxu0 %v204
      %238 = vmatprep.subr.mxu0 %v207
      %239 = vmatpush1.msra.mxu0 %v206
      %240 = vmatprep.subr.mxu0 0.0
      %241 = vmatpush1.msra.mxu0 0.0
      %242 = vmatprep.subr.mxu0 0.0
      %243 = vmatpush1.msra.mxu0 0.0
      %244 = vmatprep.subr.mxu0 0.0
      %245 = vmatpush1.msra.mxu0 0.0
      %246 = vmatprep.subr.mxu0 0.0
      %247 = vmatpush1.msra.mxu0 0.0
      %248 = vmatprep.subr.mxu0 0.0
      %249 = vmatpush1.msra.mxu0 0.0
      %250 = vmatprep.subr.mxu0 0.0
      %251 = vmatpush1.msra.mxu0 0.0
      %252 = vmatprep.subr.mxu0 0.0
      %253 = vmatpush1.msra.mxu0 0.0
      %254 = vmatprep.subr.mxu0 0.0
      %255 = vmatpush1.msra.mxu0 0.0
      %256 = vmatprep.subr.mxu0 0.0
      %257 = vmatpush1.msra.mxu0 0.0
      %258 = vmatprep.subr.mxu0 0.0
      %259 = vmatpush1.msra.mxu0 0.0
      %260 = vmatprep.subr.mxu0 0.0
      %261 = vmatpush1.msra.mxu0 0.0
      %262 = vmatprep.subr.mxu0 0.0
      %263 = vmatpush1.msra.mxu0 0.0
      %264 = vmatprep.subr.mxu0 0.0
      %265 = vmatpush1.msra.mxu0 0.0
      %266 = vmatprep.subr.mxu0 0.0
      %267 = vmatpush1.msra.mxu0 0.0
      %268 = vmatprep.subr.mxu0 0.0
      %269 = vmatpush1.msra.mxu0 0.0
      %270 = vmatprep.subr.mxu0 0.0
      %271 = vmatpush1.msra.mxu0 0.0
      %272 = vmatprep.mubr.f32.mxu0 0.0
      %273 = vmatmul.mubr.f32.gmra.mrb[0].mxu0 %v174
      %v274 = vpop.f32.mrb[0].mxu0
      %v275 = vadd.f32 0.0, %v274
      %v276 = vpop.f32.mrb[0].mxu0
      %v277 = vadd.f32 0.0, %v276
      %278 = vdwg.mxu0
      %279 = vmatprep.subr.mxu0 %v142
      %280 = vmatpush1.msra.mxu0 %v141
      %281 = vmatprep.subr.mxu0 %v144
      %282 = vmatpush1.msra.mxu0 %v143
      %283 = vmatprep.subr.mxu0 %v146
      %284 = vmatpush1.msra.mxu0 %v145
      %285 = vmatprep.subr.mxu0 %v148
      %286 = vmatpush1.msra.mxu0 %v147
      %287 = vmatprep.subr.mxu0 %v150
      %288 = vmatpush1.msra.mxu0 %v149
      %289 = vmatprep.subr.mxu0 %v152
      %290 = vmatpush1.msra.mxu0 %v151
      %291 = vmatprep.subr.mxu0 %v154
      %292 = vmatpush1.msra.mxu0 %v153
      %293 = vmatprep.subr.mxu0 %v156
      %294 = vmatpush1.msra.mxu0 %v155
      %295 = vmatprep.subr.mxu0 %v158
      %296 = vmatpush1.msra.mxu0 %v157
      %297 = vmatprep.subr.mxu0 %v160
      %298 = vmatpush1.msra.mxu0 %v159
      %299 = vmatprep.subr.mxu0 %v162
      %300 = vmatpush1.msra.mxu0 %v161
      %301 = vmatprep.subr.mxu0 %v164
      %302 = vmatpush1.msra.mxu0 %v163
      %303 = vmatprep.subr.mxu0 %v166
      %304 = vmatpush1.msra.mxu0 %v165
      %305 = vmatprep.subr.mxu0 %v168
      %306 = vmatpush1.msra.mxu0 %v167
      %307 = vmatprep.subr.mxu0 %v170
      %308 = vmatpush1.msra.mxu0 %v169
      %309 = vmatprep.subr.mxu0 %v172
      %310 = vmatpush1.msra.mxu0 %v171
      %311 = vmatprep.subr.mxu0 0.0
      %312 = vmatpush1.msra.mxu0 0.0
      %313 = vmatprep.subr.mxu0 0.0
      %314 = vmatpush1.msra.mxu0 0.0
      %315 = vmatprep.subr.mxu0 0.0
      %316 = vmatpush1.msra.mxu0 0.0
      %317 = vmatprep.subr.mxu0 0.0
      %318 = vmatpush1.msra.mxu0 0.0
      %319 = vmatprep.subr.mxu0 0.0
      %320 = vmatpush1.msra.mxu0 0.0
      %321 = vmatprep.subr.mxu0 0.0
      %322 = vmatpush1.msra.mxu0 0.0
      %323 = vmatprep.subr.mxu0 0.0
      %324 = vmatpush1.msra.mxu0 0.0
      %325 = vmatprep.subr.mxu0 0.0
      %326 = vmatpush1.msra.mxu0 0.0
      %327 = vmatprep.subr.mxu0 0.0
      %328 = vmatpush1.msra.mxu0 0.0
      %329 = vmatprep.subr.mxu0 0.0
      %330 = vmatpush1.msra.mxu0 0.0
      %331 = vmatprep.subr.mxu0 0.0
      %332 = vmatpush1.msra.mxu0 0.0
      %333 = vmatprep.subr.mxu0 0.0
      %334 = vmatpush1.msra.mxu0 0.0
      %335 = vmatprep.subr.mxu0 0.0
      %336 = vmatpush1.msra.mxu0 0.0
      %337 = vmatprep.subr.mxu0 0.0
      %338 = vmatpush1.msra.mxu0 0.0
      %339 = vmatprep.subr.mxu0 0.0
      %340 = vmatpush1.msra.mxu0 0.0
      %341 = vmatprep.subr.mxu0 0.0
      %342 = vmatpush1.msra.mxu0 0.0
      %343 = vmatprep.mubr.f32.mxu0 0.0
      %344 = vmatmul.mubr.f32.gmra.mrb[0].mxu0 %v140
      %v345 = vpop.f32.mrb[0].mxu0
      %v346 = vadd.f32 %v275, %v345
      %v347 = vpop.f32.mrb[0].mxu0
      %v348 = vadd.f32 %v277, %v347
      %349 = vdwg.mxu0
      %s350 = scalar_lea.vmem [#allocation2], 16
      %v351 = vld [vmem:[%s350] sm:$0xff]
      %s352 = scalar_lea.vmem %s128, 512
      %v353 = vld [vmem:[%s352] sm:$0xff]
      %v354 = vld [vmem:[%s352 + $0x8] sm:$0xff]
      %v355 = vld [vmem:[%s352 + $0x10] sm:$0xff]
      %v356 = vld [vmem:[%s352 + $0x18] sm:$0xff]
      %v357 = vld [vmem:[%s352 + $0x20] sm:$0xff]
      %v358 = vld [vmem:[%s352 + $0x28] sm:$0xff]
      %v359 = vld [vmem:[%s352 + $0x30] sm:$0xff]
      %v360 = vld [vmem:[%s352 + $0x38] sm:$0xff]
      %v361 = vld [vmem:[%s352 + $0x40] sm:$0xff]
      %v362 = vld [vmem:[%s352 + $0x48] sm:$0xff]
      %v363 = vld [vmem:[%s352 + $0x50] sm:$0xff]
      %v364 = vld [vmem:[%s352 + $0x58] sm:$0xff]
      %v365 = vld [vmem:[%s352 + $0x60] sm:$0xff]
      %v366 = vld [vmem:[%s352 + $0x68] sm:$0xff]
      %v367 = vld [vmem:[%s352 + $0x70] sm:$0xff]
      %v368 = vld [vmem:[%s352 + $0x78] sm:$0xff]
      %v369 = vld [vmem:[%s352 + $0x80] sm:$0xff]
      %v370 = vld [vmem:[%s352 + $0x88] sm:$0xff]
      %v371 = vld [vmem:[%s352 + $0x90] sm:$0xff]
      %v372 = vld [vmem:[%s352 + $0x98] sm:$0xff]
      %v373 = vld [vmem:[%s352 + $0xa0] sm:$0xff]
      %v374 = vld [vmem:[%s352 + $0xa8] sm:$0xff]
      %v375 = vld [vmem:[%s352 + $0xb0] sm:$0xff]
      %v376 = vld [vmem:[%s352 + $0xb8] sm:$0xff]
      %v377 = vld [vmem:[%s352 + $0xc0] sm:$0xff]
      %v378 = vld [vmem:[%s352 + $0xc8] sm:$0xff]
      %v379 = vld [vmem:[%s352 + $0xd0] sm:$0xff]
      %v380 = vld [vmem:[%s352 + $0xd8] sm:$0xff]
      %v381 = vld [vmem:[%s352 + $0xe0] sm:$0xff]
      %v382 = vld [vmem:[%s352 + $0xe8] sm:$0xff]
      %v383 = vld [vmem:[%s352 + $0xf0] sm:$0xff]
      %v384 = vld [vmem:[%s352 + $0xf8] sm:$0xff]
      %385 = vmatprep.subr.mxu0 %v354
      %386 = vmatpush1.msra.mxu0 %v353
      %387 = vmatprep.subr.mxu0 %v356
      %388 = vmatpush1.msra.mxu0 %v355
      %389 = vmatprep.subr.mxu0 %v358
      %390 = vmatpush1.msra.mxu0 %v357
      %391 = vmatprep.subr.mxu0 %v360
      %392 = vmatpush1.msra.mxu0 %v359
      %393 = vmatprep.subr.mxu0 %v362
      %394 = vmatpush1.msra.mxu0 %v361
      %395 = vmatprep.subr.mxu0 %v364
      %396 = vmatpush1.msra.mxu0 %v363
      %397 = vmatprep.subr.mxu0 %v366
      %398 = vmatpush1.msra.mxu0 %v365
      %399 = vmatprep.subr.mxu0 %v368
      %400 = vmatpush1.msra.mxu0 %v367
      %401 = vmatprep.subr.mxu0 %v370
      %402 = vmatpush1.msra.mxu0 %v369
      %403 = vmatprep.subr.mxu0 %v372
      %404 = vmatpush1.msra.mxu0 %v371
      %405 = vmatprep.subr.mxu0 %v374
      %406 = vmatpush1.msra.mxu0 %v373
      %407 = vmatprep.subr.mxu0 %v376
      %408 = vmatpush1.msra.mxu0 %v375
      %409 = vmatprep.subr.mxu0 %v378
      %410 = vmatpush1.msra.mxu0 %v377
      %411 = vmatprep.subr.mxu0 %v380
      %412 = vmatpush1.msra.mxu0 %v379
      %413 = vmatprep.subr.mxu0 %v382
      %414 = vmatpush1.msra.mxu0 %v381
      %415 = vmatprep.subr.mxu0 %v384
      %416 = vmatpush1.msra.mxu0 %v383
      %417 = vmatprep.subr.mxu0 0.0
      %418 = vmatpush1.msra.mxu0 0.0
      %419 = vmatprep.subr.mxu0 0.0
      %420 = vmatpush1.msra.mxu0 0.0
      %421 = vmatprep.subr.mxu0 0.0
      %422 = vmatpush1.msra.mxu0 0.0
      %423 = vmatprep.subr.mxu0 0.0
      %424 = vmatpush1.msra.mxu0 0.0
      %425 = vmatprep.subr.mxu0 0.0
      %426 = vmatpush1.msra.mxu0 0.0
      %427 = vmatprep.subr.mxu0 0.0
      %428 = vmatpush1.msra.mxu0 0.0
      %429 = vmatprep.subr.mxu0 0.0
      %430 = vmatpush1.msra.mxu0 0.0
      %431 = vmatprep.subr.mxu0 0.0
      %432 = vmatpush1.msra.mxu0 0.0
      %433 = vmatprep.subr.mxu0 0.0
      %434 = vmatpush1.msra.mxu0 0.0
      %435 = vmatprep.subr.mxu0 0.0
      %436 = vmatpush1.msra.mxu0 0.0
      %437 = vmatprep.subr.mxu0 0.0
      %438 = vmatpush1.msra.mxu0 0.0
      %439 = vmatprep.subr.mxu0 0.0
      %440 = vmatpush1.msra.mxu0 0.0
      %441 = vmatprep.subr.mxu0 0.0
      %442 = vmatpush1.msra.mxu0 0.0
      %443 = vmatprep.subr.mxu0 0.0
      %444 = vmatpush1.msra.mxu0 0.0
      %445 = vmatprep.subr.mxu0 0.0
      %446 = vmatpush1.msra.mxu0 0.0
      %447 = vmatprep.subr.mxu0 0.0
      %448 = vmatpush1.msra.mxu0 0.0
      %449 = vmatprep.mubr.f32.mxu0 0.0
      %450 = vmatmul.mubr.f32.gmra.mrb[0].mxu0 %v351
      %v451 = vpop.f32.mrb[0].mxu0
      %v452 = vadd.f32 0.0, %v451
      %v453 = vpop.f32.mrb[0].mxu0
      %v454 = vadd.f32 0.0, %v453
      %455 = vdwg.mxu0
      %v456 = vadd.f32 %v346, %v452
      %v457 = vadd.f32 %v348, %v454
      %s458 = scalar_lea.vmem [#allocation2], 24
      %v459 = vld [vmem:[%s458] sm:$0xff]
      %s460 = scalar_lea.vmem %s128, 768
      %v461 = vld [vmem:[%s460] sm:$0xff]
      %v462 = vld [vmem:[%s460 + $0x8] sm:$0xff]
      %v463 = vld [vmem:[%s460 + $0x10] sm:$0xff]
      %v464 = vld [vmem:[%s460 + $0x18] sm:$0xff]
      %v465 = vld [vmem:[%s460 + $0x20] sm:$0xff]
      %v466 = vld [vmem:[%s460 + $0x28] sm:$0xff]
      %v467 = vld [vmem:[%s460 + $0x30] sm:$0xff]
      %v468 = vld [vmem:[%s460 + $0x38] sm:$0xff]
      %v469 = vld [vmem:[%s460 + $0x40] sm:$0xff]
      %v470 = vld [vmem:[%s460 + $0x48] sm:$0xff]
      %v471 = vld [vmem:[%s460 + $0x50] sm:$0xff]
      %v472 = vld [vmem:[%s460 + $0x58] sm:$0xff]
      %v473 = vld [vmem:[%s460 + $0x60] sm:$0xff]
      %v474 = vld [vmem:[%s460 + $0x68] sm:$0xff]
      %v475 = vld [vmem:[%s460 + $0x70] sm:$0xff]
      %v476 = vld [vmem:[%s460 + $0x78] sm:$0xff]
      %v477 = vld [vmem:[%s460 + $0x80] sm:$0xff]
      %v478 = vld [vmem:[%s460 + $0x88] sm:$0xff]
      %v479 = vld [vmem:[%s460 + $0x90] sm:$0xff]
      %v480 = vld [vmem:[%s460 + $0x98] sm:$0xff]
      %v481 = vld [vmem:[%s460 + $0xa0] sm:$0xff]
      %v482 = vld [vmem:[%s460 + $0xa8] sm:$0xff]
      %v483 = vld [vmem:[%s460 + $0xb0] sm:$0xff]
      %v484 = vld [vmem:[%s460 + $0xb8] sm:$0xff]
      %v485 = vld [vmem:[%s460 + $0xc0] sm:$0xff]
      %v486 = vld [vmem:[%s460 + $0xc8] sm:$0xff]
      %v487 = vld [vmem:[%s460 + $0xd0] sm:$0xff]
      %v488 = vld [vmem:[%s460 + $0xd8] sm:$0xff]
      %v489 = vld [vmem:[%s460 + $0xe0] sm:$0xff]
      %v490 = vld [vmem:[%s460 + $0xe8] sm:$0xff]
      %v491 = vld [vmem:[%s460 + $0xf0] sm:$0xff]
      %v492 = vld [vmem:[%s460 + $0xf8] sm:$0xff]
      %493 = vmatprep.subr.mxu0 %v462
      %494 = vmatpush1.msra.mxu0 %v461
      %495 = vmatprep.subr.mxu0 %v464
      %496 = vmatpush1.msra.mxu0 %v463
      %497 = vmatprep.subr.mxu0 %v466
      %498 = vmatpush1.msra.mxu0 %v465
      %499 = vmatprep.subr.mxu0 %v468
      %500 = vmatpush1.msra.mxu0 %v467
      %501 = vmatprep.subr.mxu0 %v470
      %502 = vmatpush1.msra.mxu0 %v469
      %503 = vmatprep.subr.mxu0 %v472
      %504 = vmatpush1.msra.mxu0 %v471
      %505 = vmatprep.subr.mxu0 %v474
      %506 = vmatpush1.msra.mxu0 %v473
      %507 = vmatprep.subr.mxu0 %v476
      %508 = vmatpush1.msra.mxu0 %v475
      %509 = vmatprep.subr.mxu0 %v478
      %510 = vmatpush1.msra.mxu0 %v477
      %511 = vmatprep.subr.mxu0 %v480
      %512 = vmatpush1.msra.mxu0 %v479
      %513 = vmatprep.subr.mxu0 %v482
      %514 = vmatpush1.msra.mxu0 %v481
      %515 = vmatprep.subr.mxu0 %v484
      %516 = vmatpush1.msra.mxu0 %v483
      %517 = vmatprep.subr.mxu0 %v486
      %518 = vmatpush1.msra.mxu0 %v485
      %519 = vmatprep.subr.mxu0 %v488
      %520 = vmatpush1.msra.mxu0 %v487
      %521 = vmatprep.subr.mxu0 %v490
      %522 = vmatpush1.msra.mxu0 %v489
      %523 = vmatprep.subr.mxu0 %v492
      %524 = vmatpush1.msra.mxu0 %v491
      %525 = vmatprep.subr.mxu0 0.0
      %526 = vmatpush1.msra.mxu0 0.0
      %527 = vmatprep.subr.mxu0 0.0
      %528 = vmatpush1.msra.mxu0 0.0
      %529 = vmatprep.subr.mxu0 0.0
      %530 = vmatpush1.msra.mxu0 0.0
      %531 = vmatprep.subr.mxu0 0.0
      %532 = vmatpush1.msra.mxu0 0.0
      %533 = vmatprep.subr.mxu0 0.0
      %534 = vmatpush1.msra.mxu0 0.0
      %535 = vmatprep.subr.mxu0 0.0
      %536 = vmatpush1.msra.mxu0 0.0
      %537 = vmatprep.subr.mxu0 0.0
      %538 = vmatpush1.msra.mxu0 0.0
      %539 = vmatprep.subr.mxu0 0.0
      %540 = vmatpush1.msra.mxu0 0.0
      %541 = vmatprep.subr.mxu0 0.0
      %542 = vmatpush1.msra.mxu0 0.0
      %543 = vmatprep.subr.mxu0 0.0
      %544 = vmatpush1.msra.mxu0 0.0
      %545 = vmatprep.subr.mxu0 0.0
      %546 = vmatpush1.msra.mxu0 0.0
      %547 = vmatprep.subr.mxu0 0.0
      %548 = vmatpush1.msra.mxu0 0.0
      %549 = vmatprep.subr.mxu0 0.0
      %550 = vmatpush1.msra.mxu0 0.0
      %551 = vmatprep.subr.mxu0 0.0
      %552 = vmatpush1.msra.mxu0 0.0
      %553 = vmatprep.subr.mxu0 0.0
      %554 = vmatpush1.msra.mxu0 0.0
      %555 = vmatprep.subr.mxu0 0.0
      %556 = vmatpush1.msra.mxu0 0.0
      %557 = vmatprep.mubr.f32.mxu0 0.0
      %558 = vmatmul.mubr.f32.gmra.mrb[0].mxu0 %v459
      %v559 = vpop.f32.mrb[0].mxu0
      %v560 = vadd.f32 0.0, %v559
      %v561 = vpop.f32.mrb[0].mxu0
      %v562 = vadd.f32 0.0, %v561
      %563 = vdwg.mxu0
      %v564 = vadd.f32 %v456, %v560
      %v565 = vadd.f32 %v457, %v562
      %s566 = scalar_lea.vmem [#allocation2], 32
      %v567 = vld [vmem:[%s566] sm:$0xff]
      %s568 = scalar_lea.vmem %s128, 1024
      %v569 = vld [vmem:[%s568] sm:$0xff]
      %v570 = vld [vmem:[%s568 + $0x8] sm:$0xff]
      %v571 = vld [vmem:[%s568 + $0x10] sm:$0xff]
      %v572 = vld [vmem:[%s568 + $0x18] sm:$0xff]
      %v573 = vld [vmem:[%s568 + $0x20] sm:$0xff]
      %v574 = vld [vmem:[%s568 + $0x28] sm:$0xff]
      %v575 = vld [vmem:[%s568 + $0x30] sm:$0xff]
      %v576 = vld [vmem:[%s568 + $0x38] sm:$0xff]
      %v577 = vld [vmem:[%s568 + $0x40] sm:$0xff]
      %v578 = vld [vmem:[%s568 + $0x48] sm:$0xff]
      %v579 = vld [vmem:[%s568 + $0x50] sm:$0xff]
      %v580 = vld [vmem:[%s568 + $0x58] sm:$0xff]
      %v581 = vld [vmem:[%s568 + $0x60] sm:$0xff]
      %v582 = vld [vmem:[%s568 + $0x68] sm:$0xff]
      %v583 = vld [vmem:[%s568 + $0x70] sm:$0xff]
      %v584 = vld [vmem:[%s568 + $0x78] sm:$0xff]
      %v585 = vld [vmem:[%s568 + $0x80] sm:$0xff]
      %v586 = vld [vmem:[%s568 + $0x88] sm:$0xff]
      %v587 = vld [vmem:[%s568 + $0x90] sm:$0xff]
      %v588 = vld [vmem:[%s568 + $0x98] sm:$0xff]
      %v589 = vld [vmem:[%s568 + $0xa0] sm:$0xff]
      %v590 = vld [vmem:[%s568 + $0xa8] sm:$0xff]
      %v591 = vld [vmem:[%s568 + $0xb0] sm:$0xff]
      %v592 = vld [vmem:[%s568 + $0xb8] sm:$0xff]
      %v593 = vld [vmem:[%s568 + $0xc0] sm:$0xff]
      %v594 = vld [vmem:[%s568 + $0xc8] sm:$0xff]
      %v595 = vld [vmem:[%s568 + $0xd0] sm:$0xff]
      %v596 = vld [vmem:[%s568 + $0xd8] sm:$0xff]
      %v597 = vld [vmem:[%s568 + $0xe0] sm:$0xff]
      %v598 = vld [vmem:[%s568 + $0xe8] sm:$0xff]
      %v599 = vld [vmem:[%s568 + $0xf0] sm:$0xff]
      %v600 = vld [vmem:[%s568 + $0xf8] sm:$0xff]
      %601 = vmatprep.subr.mxu0 %v570
      %602 = vmatpush1.msra.mxu0 %v569
      %603 = vmatprep.subr.mxu0 %v572
      %604 = vmatpush1.msra.mxu0 %v571
      %605 = vmatprep.subr.mxu0 %v574
      %606 = vmatpush1.msra.mxu0 %v573
      %607 = vmatprep.subr.mxu0 %v576
      %608 = vmatpush1.msra.mxu0 %v575
      %609 = vmatprep.subr.mxu0 %v578
      %610 = vmatpush1.msra.mxu0 %v577
      %611 = vmatprep.subr.mxu0 %v580
      %612 = vmatpush1.msra.mxu0 %v579
      %613 = vmatprep.subr.mxu0 %v582
      %614 = vmatpush1.msra.mxu0 %v581
      %615 = vmatprep.subr.mxu0 %v584
      %616 = vmatpush1.msra.mxu0 %v583
      %617 = vmatprep.subr.mxu0 %v586
      %618 = vmatpush1.msra.mxu0 %v585
      %619 = vmatprep.subr.mxu0 %v588
      %620 = vmatpush1.msra.mxu0 %v587
      %621 = vmatprep.subr.mxu0 %v590
      %622 = vmatpush1.msra.mxu0 %v589
      %623 = vmatprep.subr.mxu0 %v592
      %624 = vmatpush1.msra.mxu0 %v591
      %625 = vmatprep.subr.mxu0 %v594
      %626 = vmatpush1.msra.mxu0 %v593
      %627 = vmatprep.subr.mxu0 %v596
      %628 = vmatpush1.msra.mxu0 %v595
      %629 = vmatprep.subr.mxu0 %v598
      %630 = vmatpush1.msra.mxu0 %v597
      %631 = vmatprep.subr.mxu0 %v600
      %632 = vmatpush1.msra.mxu0 %v599
      %633 = vmatprep.subr.mxu0 0.0
      %634 = vmatpush1.msra.mxu0 0.0
      %635 = vmatprep.subr.mxu0 0.0
      %636 = vmatpush1.msra.mxu0 0.0
      %637 = vmatprep.subr.mxu0 0.0
      %638 = vmatpush1.msra.mxu0 0.0
      %639 = vmatprep.subr.mxu0 0.0
      %640 = vmatpush1.msra.mxu0 0.0
      %641 = vmatprep.subr.mxu0 0.0
      %642 = vmatpush1.msra.mxu0 0.0
      %643 = vmatprep.subr.mxu0 0.0
      %644 = vmatpush1.msra.mxu0 0.0
      %645 = vmatprep.subr.mxu0 0.0
      %646 = vmatpush1.msra.mxu0 0.0
      %647 = vmatprep.subr.mxu0 0.0
      %648 = vmatpush1.msra.mxu0 0.0
      %649 = vmatprep.subr.mxu0 0.0
      %650 = vmatpush1.msra.mxu0 0.0
      %651 = vmatprep.subr.mxu0 0.0
      %652 = vmatpush1.msra.mxu0 0.0
      %653 = vmatprep.subr.mxu0 0.0
      %654 = vmatpush1.msra.mxu0 0.0
      %655 = vmatprep.subr.mxu0 0.0
      %656 = vmatpush1.msra.mxu0 0.0
      %657 = vmatprep.subr.mxu0 0.0
      %658 = vmatpush1.msra.mxu0 0.0
      %659 = vmatprep.subr.mxu0 0.0
      %660 = vmatpush1.msra.mxu0 0.0
      %661 = vmatprep.subr.mxu0 0.0
      %662 = vmatpush1.msra.mxu0 0.0
      %663 = vmatprep.subr.mxu0 0.0
      %664 = vmatpush1.msra.mxu0 0.0
      %665 = vmatprep.mubr.f32.mxu0 0.0
      %666 = vmatmul.mubr.f32.gmra.mrb[0].mxu0 %v567
      %v667 = vpop.f32.mrb[0].mxu0
      %v668 = vadd.f32 0.0, %v667
      %v669 = vpop.f32.mrb[0].mxu0
      %v670 = vadd.f32 0.0, %v669
      %671 = vdwg.mxu0
      %v672 = vadd.f32 %v564, %v668
      %v673 = vadd.f32 %v565, %v670
      %p674 = scmp.lt.s32.totalorder %s13, 4
      // Predicated region
      $region33: #{_forward_impl.1} parent=27 // pred_check
        %p675 = pneg %p674
      $region34: #{_forward_impl.1} parent=27 // pred_check_branch
        %677 = sbr.rel (%p675) target = $region36
      $region35: #{_forward_impl.1} parent=27 // pred_region
        %v678 = vmul.f32 %v672, %v673
        %v679 = vsub.f32 1.0, %v678
        %s680 = sadd.s32 %s13, 1
        %s681 = smul.u32 %s680, 8
        %s682 = scalar_lea.vmem [#allocation2], %s681
        %683 = vst [vmem:[%s682] sm:$0xff] %v679
      $region36: #{_forward_impl.1} parent=27 // pred_fallthru
        _
      %p684 = scmp.eq.s32.totalorder %s13, 4
      // Predicated region
      $region37: #{_forward_impl.1} parent=27 // pred_check
        %p685 = pneg %p684
      $region38: #{_forward_impl.1} parent=27 // pred_check_branch
        %687 = sbr.rel (%p685) target = $region40
      $region39: #{_forward_impl.1} parent=27 // pred_region
        %688 = vst [vmem:[%s2] sm:$0xff] %v672
      $region40: #{_forward_impl.1} parent=27 // pred_fallthru
        _
      // Predicated region
      $region41: #{_forward_impl.1} parent=27 // pred_check
        %p689 = pneg %p73
      $region42: #{_forward_impl.1} parent=27 // pred_check_branch
        %691 = sbr.rel (%p689) target = $region44
      $region43: #{_forward_impl.1} parent=27 // pred_region
        _
      $region44: #{_forward_impl.1} parent=27 // pred_fallthru
        _
      // Predicated region
      $region45: #{_forward_impl.1} parent=27 // pred_check
        %p692 = pneg %p73
      $region46: #{_forward_impl.1} parent=27 // pred_check_branch
        %694 = sbr.rel (%p692) target = $region48
      $region47: #{_forward_impl.1} parent=27 // pred_region
        _
      $region48: #{_forward_impl.1} parent=27 // pred_fallthru
        _
    $region28: #{_forward_impl.1} parent=5 // pred_fallthru
      _
    %p695 = scmp.le.s32.totalorder 2, %s8
    // Predicated region
    $region49: #{_forward_impl.1} parent=5 // pred_check
      %p696 = pneg %p695
    $region50: #{_forward_impl.1} parent=5 // pred_check_branch
      %698 = sbr.rel (%p696) target = $region52
    $region51: #{_forward_impl.1} parent=5 // pred_region
      %s699 = ssub.s32 %s8, 2
    $region52: #{_forward_impl.1} parent=5 // pred_fallthru
      _
  $region6: #{_forward_impl.1} parent=0 // loop_footer
    %s12 = sadd.s32 1, %s8
  $region7: #{_forward_impl.1} parent=0 // loop_footer_branch
    %7 = sbr.rel target = $region3
  $region8: #{_forward_impl.1} parent=0 // loop_exit
    _

</llo_original>
